<compile_context>
chip_gen: v5e
topology: v5e:2x2
jax: 0.10.0
libtpu: 0.0.40
codegen_flags: <defaults>
</compile_context>

<pallas_src>
import jax
import jax.numpy as jnp
from jax.experimental import pallas as pl
from jax.experimental.pallas import tpu as pltpu


def _round_up(n, m):
    return ((n + m - 1) // m) * m


def _make_mlp_kernel(num_hidden):
    """Kernel for `num_hidden` (Linear+ReLU) layers then Linear(->1)+Sigmoid."""

    def kernel(*refs):
        x_ref, out_ref = refs[0], refs[-1]
        p_refs = refs[1:-1]                       # interleaved (w, b) pairs, all 2D

        h = x_ref[...]                            # bf16 (tile_m, input_dim)
        for l in range(num_hidden):
            w = p_refs[2 * l][...]                # bf16 (fan_in, fan_out)
            b = p_refs[2 * l + 1][...]            # f32  (1, fan_out)
            h = jnp.dot(h, w, preferred_element_type=jnp.float32)
            h = jnp.maximum(h + b, 0.0).astype(jnp.bfloat16)

        w_out = p_refs[2 * num_hidden][...]       # bf16 (1, fan_in) (PyTorch layout)
        b_out = p_refs[2 * num_hidden + 1][...]   # f32  (1, 1)
        # Contract the feature axis of both operands -> (1, tile_m), lane-major.
        logits = jax.lax.dot_general(
            w_out, h,
            dimension_numbers=(((1,), (1,)), ((), ())),
            preferred_element_type=jnp.float32,
        )
        out_ref[...] = jax.nn.sigmoid(logits + b_out)

    return kernel


def mlp_forward(x, params, tile_m=16384):
    """x: [batch, input_dim] float32.

    params: interleaved (w, b) per layer. Hidden-layer weights are stored
    transposed as (fan_in, fan_out); the final weight keeps the PyTorch
    (1, fan_in) layout; biases are (1, fan_out). Returns [batch, 1] float32.
    """
    batch, input_dim = x.shape
    num_hidden = len(params) // 2 - 1

    # Tile: multiple of 128 (lane-dense output block), no bigger than needed.
    tile_m = max(128, min(tile_m, _round_up(batch, 128)))
    tile_m = _round_up(tile_m, 128)
    padded = _round_up(batch, tile_m)
    if padded != batch:
        x = jnp.pad(x, ((0, padded - batch), (0, 0)))
    grid_m = padded // tile_m

    # bf16 inputs / weights (HBM-bound kernel); biases stay f32, f32 accumulate.
    x_bf = x.astype(jnp.bfloat16)
    casted = [p.astype(jnp.bfloat16) if i % 2 == 0 else p
              for i, p in enumerate(params)]

    in_specs = [pl.BlockSpec((tile_m, input_dim), lambda i: (i, 0))]
    in_specs += [pl.BlockSpec(p.shape, lambda i: (0, 0)) for p in casted]

    out = pl.pallas_call(
        _make_mlp_kernel(num_hidden),
        out_shape=jax.ShapeDtypeStruct((1, padded), jnp.float32),
        grid=(grid_m,),
        in_specs=in_specs,
        out_specs=pl.BlockSpec((1, tile_m), lambda i: (0, i)),
        compiler_params=pltpu.CompilerParams(
            dimension_semantics=("parallel",)),
    )(x_bf, *casted)

    return out.reshape(padded, 1)[:batch]


def init_params(key, input_dim, hidden_dims):
    """nn.Linear default init: U(-1/sqrt(fan_in), 1/sqrt(fan_in)).

    Hidden weights are returned pre-transposed to (in, out); the output-layer
    weight keeps the (1, in) layout; biases are (1, out)."""
    dims = [input_dim] + list(hidden_dims) + [1]
    params = []
    for i in range(len(dims) - 1):
        fan_in, fan_out = dims[i], dims[i + 1]
        last = i == len(dims) - 2
        key, kw, kb = jax.random.split(key, 3)
        bound = 1.0 / jnp.sqrt(fan_in)
        w_shape = (fan_out, fan_in) if last else (fan_in, fan_out)
        w = jax.random.uniform(kw, w_shape, jnp.float32, -bound, bound)
        b = jax.random.uniform(kb, (1, fan_out), jnp.float32, -bound, bound)
        params.extend([w, b])
    return tuple(params)


def mlp_reference(x, params):
    """Pure-JAX f32 reference (matches the PyTorch module's forward)."""
    num_hidden = len(params) // 2 - 1
    h = x
    for l in range(num_hidden):
        w, b = params[2 * l], params[2 * l + 1]
        h = jnp.maximum(h @ w + b, 0.0)
    w_out, b_out = params[-2], params[-1]          # (1, fan_in), (1, 1)
    return jax.nn.sigmoid(h @ w_out.T + b_out)


if __name__ == "__main__":
    key = jax.random.PRNGKey(0)
    batch, input_dim, hidden_dims = 300, 32, [32, 16]

    key, kx = jax.random.split(key)
    x = jax.random.normal(kx, (batch, input_dim), jnp.float32)
    params = init_params(key, input_dim, hidden_dims)

    ref = mlp_reference(x, params)

    # Default tile (single grid step for this small batch).
    out = jax.block_until_ready(mlp_forward(x, params))
    assert out.shape == (batch, 1), out.shape
    assert jnp.allclose(out, ref, atol=2e-2, rtol=2e-2), "mismatch vs reference"

    # Small tile to exercise multiple grid steps + tail padding path.
    out_tiled = jax.block_until_ready(mlp_forward(x, params, tile_m=128))
    assert out_tiled.shape == (batch, 1), out_tiled.shape
    assert jnp.allclose(out_tiled, ref, atol=2e-2, rtol=2e-2), "mismatch (tiled)"

    print("KERNEL_OK")
</pallas_src>

<mosaic_0001>
module attributes {stable_mosaic.version = 11 : i64} {
  func.func @kernel(%arg0: i32, %arg1: memref<384x32xbf16, #tpu.memory_space<vmem>>, %arg2: memref<32x32xbf16, #tpu.memory_space<vmem>>, %arg3: memref<1x32xf32, #tpu.memory_space<vmem>>, %arg4: memref<32x16xbf16, #tpu.memory_space<vmem>>, %arg5: memref<1x16xf32, #tpu.memory_space<vmem>>, %arg6: memref<1x16xbf16, #tpu.memory_space<vmem>>, %arg7: memref<1x1xf32, #tpu.memory_space<vmem>>, %arg8: memref<1x384xf32, #tpu.memory_space<vmem>>) attributes {dimension_semantics = [#tpu.dimension_semantics<parallel>], iteration_bounds = array<i64: 1>, scalar_prefetch = 0 : i64, scratch_operands = 0 : i64, tpu.core_type = #tpu.core_type<tc>, window_params = [{transform_indices = @transform_0, window_bounds = array<i64: 384, 32>}, {pipeline_mode = #tpu.pipeline_mode<synchronous>, transform_indices = @transform_1, window_bounds = array<i64: 32, 32>}, {pipeline_mode = #tpu.pipeline_mode<synchronous>, transform_indices = @transform_2, window_bounds = array<i64: 1, 32>}, {pipeline_mode = #tpu.pipeline_mode<synchronous>, transform_indices = @transform_3, window_bounds = array<i64: 32, 16>}, {pipeline_mode = #tpu.pipeline_mode<synchronous>, transform_indices = @transform_4, window_bounds = array<i64: 1, 16>}, {pipeline_mode = #tpu.pipeline_mode<synchronous>, transform_indices = @transform_5, window_bounds = array<i64: 1, 16>}, {pipeline_mode = #tpu.pipeline_mode<synchronous>, transform_indices = @transform_6, window_bounds = array<i64: 1, 1>}, {transform_indices = @transform_7, window_bounds = array<i64: 1, 384>}]} {
    %c0 = arith.constant 0 : index
    %c0_0 = arith.constant 0 : index
    %0 = vector.load %arg1[%c0, %c0_0] : memref<384x32xbf16, #tpu.memory_space<vmem>>, vector<384x32xbf16>
    %c0_1 = arith.constant 0 : index
    %c0_2 = arith.constant 0 : index
    %1 = vector.load %arg2[%c0_1, %c0_2] : memref<32x32xbf16, #tpu.memory_space<vmem>>, vector<32x32xbf16>
    %c0_3 = arith.constant 0 : index
    %c0_4 = arith.constant 0 : index
    %2 = vector.load %arg3[%c0_3, %c0_4] : memref<1x32xf32, #tpu.memory_space<vmem>>, vector<1x32xf32>
    %cst = arith.constant dense<0.000000e+00> : vector<384x32xf32>
    %3 = tpu.matmul %0, %1, %cst {dimension_numbers = #tpu.dot_dimension_numbers<[1], [0], [0], [1], [0, 0, 1, 1], [], []>} : vector<384x32xbf16>, vector<32x32xbf16>, vector<384x32xf32> -> vector<384x32xf32>
    %4 = vector.broadcast %2 : vector<1x32xf32> to vector<384x32xf32>
    %5 = arith.addf %3, %4 : vector<384x32xf32>
    %cst_5 = arith.constant 0.000000e+00 : f32
    %6 = vector.broadcast %cst_5 : f32 to vector<384x32xf32>
    %7 = arith.maximumf %5, %6 : vector<384x32xf32>
    %8 = arith.truncf %7 : vector<384x32xf32> to vector<384x32xbf16>
    %c0_6 = arith.constant 0 : index
    %c0_7 = arith.constant 0 : index
    %9 = vector.load %arg4[%c0_6, %c0_7] : memref<32x16xbf16, #tpu.memory_space<vmem>>, vector<32x16xbf16>
    %c0_8 = arith.constant 0 : index
    %c0_9 = arith.constant 0 : index
    %10 = vector.load %arg5[%c0_8, %c0_9] : memref<1x16xf32, #tpu.memory_space<vmem>>, vector<1x16xf32>
    %cst_10 = arith.constant dense<0.000000e+00> : vector<384x16xf32>
    %11 = tpu.matmul %8, %9, %cst_10 {dimension_numbers = #tpu.dot_dimension_numbers<[1], [0], [0], [1], [0, 0, 1, 1], [], []>} : vector<384x32xbf16>, vector<32x16xbf16>, vector<384x16xf32> -> vector<384x16xf32>
    %12 = vector.broadcast %10 : vector<1x16xf32> to vector<384x16xf32>
    %13 = arith.addf %11, %12 : vector<384x16xf32>
    %cst_11 = arith.constant 0.000000e+00 : f32
    %14 = vector.broadcast %cst_11 : f32 to vector<384x16xf32>
    %15 = arith.maximumf %13, %14 : vector<384x16xf32>
    %16 = arith.truncf %15 : vector<384x16xf32> to vector<384x16xbf16>
    %c0_12 = arith.constant 0 : index
    %c0_13 = arith.constant 0 : index
    %17 = vector.load %arg6[%c0_12, %c0_13] : memref<1x16xbf16, #tpu.memory_space<vmem>>, vector<1x16xbf16>
    %c0_14 = arith.constant 0 : index
    %c0_15 = arith.constant 0 : index
    %18 = vector.load %arg7[%c0_14, %c0_15] : memref<1x1xf32, #tpu.memory_space<vmem>>, vector<1x1xf32>
    %cst_16 = arith.constant dense<0.000000e+00> : vector<1x384xf32>
    %19 = tpu.matmul %17, %16, %cst_16 {dimension_numbers = #tpu.dot_dimension_numbers<[1], [1], [0], [0], [0, 0, 1, 0], [], []>} : vector<1x16xbf16>, vector<384x16xbf16>, vector<1x384xf32> -> vector<1x384xf32>
    %20 = vector.broadcast %18 : vector<1x1xf32> to vector<1x384xf32>
    %21 = arith.addf %19, %20 : vector<1x384xf32>
    %22 = arith.negf %21 : vector<1x384xf32>
    %23 = math.exp %22 : vector<1x384xf32>
    %cst_17 = arith.constant 1.000000e+00 : f32
    %24 = vector.broadcast %cst_17 : f32 to vector<1x384xf32>
    %25 = arith.addf %24, %23 : vector<1x384xf32>
    %26 = arith.divf %24, %25 : vector<1x384xf32>
    %c0_18 = arith.constant 0 : index
    %c0_19 = arith.constant 0 : index
    %27 = vector.load %arg8[%c0_18, %c0_19] : memref<1x384xf32, #tpu.memory_space<vmem>>, vector<1x384xf32>
    tpu.vector_store %arg8[%c0_18, %c0_19], %26 {strides = array<i32>} : memref<1x384xf32, #tpu.memory_space<vmem>>, vector<1x384xf32>,
    return
  }
  func.func @transform_0(%arg0: i32) -> (i32, i32) {
    %c0_i32 = arith.constant 0 : i32
    %c0_i32_0 = arith.constant 0 : i32
    return %arg0, %c0_i32 : i32, i32
  }
  func.func @transform_1(%arg0: i32) -> (i32, i32) {
    %c0_i32 = arith.constant 0 : i32
    %c0_i32_0 = arith.constant 0 : i32
    %c0_i32_1 = arith.constant 0 : i32
    return %c0_i32, %c0_i32_0 : i32, i32
  }
  func.func @transform_2(%arg0: i32) -> (i32, i32) {
    %c0_i32 = arith.constant 0 : i32
    %c0_i32_0 = arith.constant 0 : i32
    %c0_i32_1 = arith.constant 0 : i32
    return %c0_i32, %c0_i32_0 : i32, i32
  }
  func.func @transform_3(%arg0: i32) -> (i32, i32) {
    %c0_i32 = arith.constant 0 : i32
    %c0_i32_0 = arith.constant 0 : i32
    %c0_i32_1 = arith.constant 0 : i32
    return %c0_i32, %c0_i32_0 : i32, i32
  }
  func.func @transform_4(%arg0: i32) -> (i32, i32) {
    %c0_i32 = arith.constant 0 : i32
    %c0_i32_0 = arith.constant 0 : i32
    %c0_i32_1 = arith.constant 0 : i32
    return %c0_i32, %c0_i32_0 : i32, i32
  }
  func.func @transform_5(%arg0: i32) -> (i32, i32) {
    %c0_i32 = arith.constant 0 : i32
    %c0_i32_0 = arith.constant 0 : i32
    %c0_i32_1 = arith.constant 0 : i32
    return %c0_i32, %c0_i32_0 : i32, i32
  }
  func.func @transform_6(%arg0: i32) -> (i32, i32) {
    %c0_i32 = arith.constant 0 : i32
    %c0_i32_0 = arith.constant 0 : i32
    %c0_i32_1 = arith.constant 0 : i32
    return %c0_i32, %c0_i32_0 : i32, i32
  }
  func.func @transform_7(%arg0: i32) -> (i32, i32) {
    %c0_i32 = arith.constant 0 : i32
    %c0_i32_0 = arith.constant 0 : i32
    return %c0_i32, %arg0 : i32, i32
  }
}

</mosaic_0001>

<llo_original>
// kernel: tpu_custom_call.1
$region0: #{tpu_custom_call.1}
  #allocation0 [shape = 'u32[]', space=smem, size = 0x4, offset = 0x4, fixed_abs, tag = 'smem constant byte address 0x4 - core index']
  #allocation1 [shape = 'u32[72,128]{1,0:T(1,128)}', space=vmem, size = 0x9000, scoped, tag = 'internal scratch']
  #allocation2 [shape = 'f32[1,1]{1,0:T(1,128)S(1)}', space=vmem, size = 0x200, scoped, tag = 'scoped memory for tpu_custom_call.1']
  %s0 = inlined_call_operand.vmem [shape: bf16[384,32], index: 0, kind: input, shape index: {}]
  %s1 = inlined_call_operand.vmem [shape: bf16[32,32], index: 1, kind: input, shape index: {}]
  %s2 = inlined_call_operand.vmem [shape: f32[1,32], index: 2, kind: input, shape index: {}]
  %s3 = inlined_call_operand.vmem [shape: bf16[32,16], index: 3, kind: input, shape index: {}]
  %s4 = inlined_call_operand.vmem [shape: f32[1,16], index: 4, kind: input, shape index: {}]
  %s5 = inlined_call_operand.vmem [shape: bf16[1,16], index: 5, kind: input, shape index: {}]
  %s6 = inlined_call_operand.<no memory space> [shape: f32[1,1], index: 6, kind: input, shape index: {}]
  %s7 = inlined_call_operand.hbm [shape: f32[1,384], index: 7, kind: output, shape index: {}]
  %s8 = sld [smem:[#allocation0]]
  $region38: #{tpu_custom_call.1} parent=0
    _
  %s10 = ssub.s32 1, %s8
  %s11 = scalar_select 0, %s10, %s8
  %v12 = vstv %s6
  %13 = vst [vmem:[#allocation2] sm:$0x1] %v12
  $region1: #{tpu_custom_call.1} parent=0
    #allocation3 [shape = 'u8[1536]{0}', space=vmem, size = 0x800, scoped, tag = 'output window, operand 0, single buffered']
    #allocation4 [shape = 's32[1]{0}', space=sflag, size = 0x4, scoped, tag = 'scoped memory for tpu_custom_call.1']
    %14 = vsyncpa [#allocation4], 0
    // Predicated region
    $region2: #{tpu_custom_call.1} parent=1 // pred_check
      _
    $region3: #{tpu_custom_call.1} parent=1 // pred_check_branch
      %16 = sbr.rel (0) target = $region5
    $region4: #{tpu_custom_call.1} parent=1 // pred_region
      _
    $region5: #{tpu_custom_call.1} parent=1 // pred_fallthru
      _
    // Predicated region
    $region6: #{tpu_custom_call.1} parent=1 // pred_check
      _
    $region7: #{tpu_custom_call.1} parent=1 // pred_check_branch
      %18 = sbr.rel (0) target = $region9
    $region8: #{tpu_custom_call.1} parent=1 // pred_region
      _
    $region9: #{tpu_custom_call.1} parent=1 // pred_fallthru
      _
    // Predicated region
    $region10: #{tpu_custom_call.1} parent=1 // pred_check
      _
    $region11: #{tpu_custom_call.1} parent=1 // pred_check_branch
      %20 = sbr.rel (0) target = $region13
    $region12: #{tpu_custom_call.1} parent=1 // pred_region
      _
    $region13: #{tpu_custom_call.1} parent=1 // pred_fallthru
      _
    // Predicated region
    $region14: #{tpu_custom_call.1} parent=1 // pred_check
      _
    $region15: #{tpu_custom_call.1} parent=1 // pred_check_branch
      %22 = sbr.rel (0) target = $region17
    $region16: #{tpu_custom_call.1} parent=1 // pred_region
      _
    $region17: #{tpu_custom_call.1} parent=1 // pred_fallthru
      _
    // Predicated region
    $region18: #{tpu_custom_call.1} parent=1 // pred_check
      _
    $region19: #{tpu_custom_call.1} parent=1 // pred_check_branch
      %24 = sbr.rel (0) target = $region21
    $region20: #{tpu_custom_call.1} parent=1 // pred_region
      _
    $region21: #{tpu_custom_call.1} parent=1 // pred_fallthru
      _
    // Predicated region
    $region22: #{tpu_custom_call.1} parent=1 // pred_check
      _
    $region23: #{tpu_custom_call.1} parent=1 // pred_check_branch
      %26 = sbr.rel (0) target = $region25
    $region24: #{tpu_custom_call.1} parent=1 // pred_region
      _
    $region25: #{tpu_custom_call.1} parent=1 // pred_fallthru
      _
    // Predicated region
    $region26: #{tpu_custom_call.1} parent=1 // pred_check
      _
    $region27: #{tpu_custom_call.1} parent=1 // pred_check_branch
      %28 = sbr.rel (0) target = $region29
    $region28: #{tpu_custom_call.1} parent=1 // pred_region
      _
    $region29: #{tpu_custom_call.1} parent=1 // pred_fallthru
      _
    %v30 = vld [vmem:[%s0] sm:$0xf]
    %v31 = vld [vmem:[%s0 + $0x4] sm:$0xf]
    %v32 = vld [vmem:[%s0 + $0x8] sm:$0xf]
    %v33 = vld [vmem:[%s0 + $0xc] sm:$0xf]
    %v34 = vld [vmem:[%s0 + $0x10] sm:$0xf]
    %v35 = vld [vmem:[%s0 + $0x14] sm:$0xf]
    %v36 = vld [vmem:[%s0 + $0x18] sm:$0xf]
    %v37 = vld [vmem:[%s0 + $0x1c] sm:$0xf]
    %v38 = vld [vmem:[%s0 + $0x20] sm:$0xf]
    %v39 = vld [vmem:[%s0 + $0x24] sm:$0xf]
    %v40 = vld [vmem:[%s0 + $0x28] sm:$0xf]
    %v41 = vld [vmem:[%s0 + $0x2c] sm:$0xf]
    %v42 = vld [vmem:[%s0 + $0x30] sm:$0xf]
    %v43 = vld [vmem:[%s0 + $0x34] sm:$0xf]
    %v44 = vld [vmem:[%s0 + $0x38] sm:$0xf]
    %v45 = vld [vmem:[%s0 + $0x3c] sm:$0xf]
    %v46 = vld [vmem:[%s0 + $0x40] sm:$0xf]
    %v47 = vld [vmem:[%s0 + $0x44] sm:$0xf]
    %v48 = vld [vmem:[%s0 + $0x48] sm:$0xf]
    %v49 = vld [vmem:[%s0 + $0x4c] sm:$0xf]
    %v50 = vld [vmem:[%s0 + $0x50] sm:$0xf]
    %v51 = vld [vmem:[%s0 + $0x54] sm:$0xf]
    %v52 = vld [vmem:[%s0 + $0x58] sm:$0xf]
    %v53 = vld [vmem:[%s0 + $0x5c] sm:$0xf]
    %v54 = vld [vmem:[%s0 + $0x60] sm:$0xf]
    %v55 = vld [vmem:[%s0 + $0x64] sm:$0xf]
    %v56 = vld [vmem:[%s0 + $0x68] sm:$0xf]
    %v57 = vld [vmem:[%s0 + $0x6c] sm:$0xf]
    %v58 = vld [vmem:[%s0 + $0x70] sm:$0xf]
    %v59 = vld [vmem:[%s0 + $0x74] sm:$0xf]
    %v60 = vld [vmem:[%s0 + $0x78] sm:$0xf]
    %v61 = vld [vmem:[%s0 + $0x7c] sm:$0xf]
    %v62 = vld [vmem:[%s0 + $0x80] sm:$0xf]
    %v63 = vld [vmem:[%s0 + $0x84] sm:$0xf]
    %v64 = vld [vmem:[%s0 + $0x88] sm:$0xf]
    %v65 = vld [vmem:[%s0 + $0x8c] sm:$0xf]
    %v66 = vld [vmem:[%s0 + $0x90] sm:$0xf]
    %v67 = vld [vmem:[%s0 + $0x94] sm:$0xf]
    %v68 = vld [vmem:[%s0 + $0x98] sm:$0xf]
    %v69 = vld [vmem:[%s0 + $0x9c] sm:$0xf]
    %v70 = vld [vmem:[%s0 + $0xa0] sm:$0xf]
    %v71 = vld [vmem:[%s0 + $0xa4] sm:$0xf]
    %v72 = vld [vmem:[%s0 + $0xa8] sm:$0xf]
    %v73 = vld [vmem:[%s0 + $0xac] sm:$0xf]
    %v74 = vld [vmem:[%s0 + $0xb0] sm:$0xf]
    %v75 = vld [vmem:[%s0 + $0xb4] sm:$0xf]
    %v76 = vld [vmem:[%s0 + $0xb8] sm:$0xf]
    %v77 = vld [vmem:[%s0 + $0xbc] sm:$0xf]
    %v78 = vld [vmem:[%s1] sm:$0xf]
    %v79 = vld [vmem:[%s1 + $0x4] sm:$0xf]
    %v80 = vld [vmem:[%s1 + $0x8] sm:$0xf]
    %v81 = vld [vmem:[%s1 + $0xc] sm:$0xf]
    %v82 = vld [vmem:[%s2] sm:$0x1]
    %v84 = vperm.slane %v82, 0
    %v134 = vunpack.c.l.b16 %v30
    %v135 = vunpack.c.l.b16 %v31
    %v136 = vunpack.c.l.b16 %v32
    %v137 = vunpack.c.l.b16 %v33
    %v138 = vunpack.c.l.b16 %v34
    %v139 = vunpack.c.l.b16 %v35
    %v140 = vunpack.c.l.b16 %v36
    %v141 = vunpack.c.l.b16 %v37
    %v142 = vunpack.c.l.b16 %v38
    %v143 = vunpack.c.l.b16 %v39
    %v144 = vunpack.c.l.b16 %v40
    %v145 = vunpack.c.l.b16 %v41
    %v146 = vunpack.c.l.b16 %v42
    %v147 = vunpack.c.l.b16 %v43
    %v148 = vunpack.c.l.b16 %v44
    %v149 = vunpack.c.l.b16 %v45
    %v150 = vunpack.c.l.b16 %v46
    %v151 = vunpack.c.l.b16 %v47
    %v152 = vunpack.c.l.b16 %v48
    %v153 = vunpack.c.l.b16 %v49
    %v154 = vunpack.c.l.b16 %v50
    %v155 = vunpack.c.l.b16 %v51
    %v156 = vunpack.c.l.b16 %v52
    %v157 = vunpack.c.l.b16 %v53
    %v158 = vunpack.c.l.b16 %v54
    %v159 = vunpack.c.l.b16 %v55
    %v160 = vunpack.c.l.b16 %v56
    %v161 = vunpack.c.l.b16 %v57
    %v162 = vunpack.c.l.b16 %v58
    %v163 = vunpack.c.l.b16 %v59
    %v164 = vunpack.c.l.b16 %v60
    %v165 = vunpack.c.l.b16 %v61
    %v166 = vunpack.c.l.b16 %v62
    %v167 = vunpack.c.l.b16 %v63
    %v168 = vunpack.c.l.b16 %v64
    %v169 = vunpack.c.l.b16 %v65
    %v170 = vunpack.c.l.b16 %v66
    %v171 = vunpack.c.l.b16 %v67
    %v172 = vunpack.c.l.b16 %v68
    %v173 = vunpack.c.l.b16 %v69
    %v174 = vunpack.c.l.b16 %v70
    %v175 = vunpack.c.l.b16 %v71
    %v176 = vunpack.c.l.b16 %v72
    %v177 = vunpack.c.l.b16 %v73
    %v178 = vunpack.c.l.b16 %v74
    %v179 = vunpack.c.l.b16 %v75
    %v180 = vunpack.c.l.b16 %v76
    %v181 = vunpack.c.l.b16 %v77
    %v182 = vpack.c.b16 %v135, %v134
    %v183 = vpack.c.b16 %v137, %v136
    %v184 = vpack.c.b16 %v139, %v138
    %v185 = vpack.c.b16 %v141, %v140
    %v186 = vpack.c.b16 %v143, %v142
    %v187 = vpack.c.b16 %v145, %v144
    %v188 = vpack.c.b16 %v147, %v146
    %v189 = vpack.c.b16 %v149, %v148
    %v190 = vpack.c.b16 %v151, %v150
    %v191 = vpack.c.b16 %v153, %v152
    %v192 = vpack.c.b16 %v155, %v154
    %v193 = vpack.c.b16 %v157, %v156
    %v194 = vpack.c.b16 %v159, %v158
    %v195 = vpack.c.b16 %v161, %v160
    %v196 = vpack.c.b16 %v163, %v162
    %v197 = vpack.c.b16 %v165, %v164
    %v198 = vpack.c.b16 %v167, %v166
    %v199 = vpack.c.b16 %v169, %v168
    %v200 = vpack.c.b16 %v171, %v170
    %v201 = vpack.c.b16 %v173, %v172
    %v202 = vpack.c.b16 %v175, %v174
    %v203 = vpack.c.b16 %v177, %v176
    %v204 = vpack.c.b16 %v179, %v178
    %v205 = vpack.c.b16 %v181, %v180
    %v210 = vunpack.c.l.b16 %v78
    %v211 = vunpack.c.l.b16 %v79
    %v212 = vunpack.c.l.b16 %v80
    %v213 = vunpack.c.l.b16 %v81
    %v214 = vpack.c.b16 %v211, %v210
    %v215 = vpack.c.b16 %v213, %v212
    %vm218 = vcmask 261120
    %v220 = vsel %vm218, %v182, 0
    %v223 = vsel %vm218, %v183, 0
    %v226 = vsel %vm218, %v184, 0
    %v229 = vsel %vm218, %v185, 0
    %v232 = vsel %vm218, %v186, 0
    %v235 = vsel %vm218, %v187, 0
    %v238 = vsel %vm218, %v188, 0
    %v241 = vsel %vm218, %v189, 0
    %v244 = vsel %vm218, %v190, 0
    %v247 = vsel %vm218, %v191, 0
    %v250 = vsel %vm218, %v192, 0
    %v253 = vsel %vm218, %v193, 0
    %v256 = vsel %vm218, %v194, 0
    %v259 = vsel %vm218, %v195, 0
    %v262 = vsel %vm218, %v196, 0
    %v265 = vsel %vm218, %v197, 0
    %v268 = vsel %vm218, %v198, 0
    %v271 = vsel %vm218, %v199, 0
    %v274 = vsel %vm218, %v200, 0
    %v277 = vsel %vm218, %v201, 0
    %v280 = vsel %vm218, %v202, 0
    %v283 = vsel %vm218, %v203, 0
    %v286 = vsel %vm218, %v204, 0
    %v289 = vsel %vm218, %v205, 0
    %291 = vmatpush.bf16.msra.mxu0 0
    %292 = vmatpush.bf16.msra.mxu0 0
    %293 = vmatpush.bf16.msra.mxu0 0
    %294 = vmatpush.bf16.msra.mxu0 0
    %295 = vmatpush.bf16.msra.mxu0 0
    %296 = vmatpush.bf16.msra.mxu0 0
    %297 = vmatpush.bf16.msra.mxu0 %v215
    %298 = vmatpush.bf16.msra.mxu0 %v214
    %299 = vmatmul.bf16.gmra.mxu0 %v220
    %v300 = vpop.f32.mrf.mxu0
    %v301 = vadd.f32 %v84, %v300
    %v302 = vpop.f32.mrf.mxu0
    %v303 = vadd.f32 %v84, %v302
    %304 = vmatmul.bf16.gmra.mxu0 %v223
    %v305 = vpop.f32.mrf.mxu0
    %v306 = vadd.f32 %v84, %v305
    %v307 = vpop.f32.mrf.mxu0
    %v308 = vadd.f32 %v84, %v307
    %309 = vmatmul.bf16.gmra.mxu0 %v226
    %v310 = vpop.f32.mrf.mxu0
    %v311 = vadd.f32 %v84, %v310
    %v312 = vpop.f32.mrf.mxu0
    %v313 = vadd.f32 %v84, %v312
    %314 = vmatmul.bf16.gmra.mxu0 %v229
    %v315 = vpop.f32.mrf.mxu0
    %v316 = vadd.f32 %v84, %v315
    %v317 = vpop.f32.mrf.mxu0
    %v318 = vadd.f32 %v84, %v317
    %319 = vmatmul.bf16.gmra.mxu0 %v232
    %v320 = vpop.f32.mrf.mxu0
    %v321 = vadd.f32 %v84, %v320
    %v322 = vpop.f32.mrf.mxu0
    %v323 = vadd.f32 %v84, %v322
    %324 = vmatmul.bf16.gmra.mxu0 %v235
    %v325 = vpop.f32.mrf.mxu0
    %v326 = vadd.f32 %v84, %v325
    %v327 = vpop.f32.mrf.mxu0
    %v328 = vadd.f32 %v84, %v327
    %329 = vmatmul.bf16.gmra.mxu0 %v238
    %v330 = vpop.f32.mrf.mxu0
    %v331 = vadd.f32 %v84, %v330
    %v332 = vpop.f32.mrf.mxu0
    %v333 = vadd.f32 %v84, %v332
    %334 = vmatmul.bf16.gmra.mxu0 %v241
    %v335 = vpop.f32.mrf.mxu0
    %v336 = vadd.f32 %v84, %v335
    %v337 = vpop.f32.mrf.mxu0
    %v338 = vadd.f32 %v84, %v337
    %339 = vmatmul.bf16.gmra.mxu0 %v244
    %v340 = vpop.f32.mrf.mxu0
    %v341 = vadd.f32 %v84, %v340
    %v342 = vpop.f32.mrf.mxu0
    %v343 = vadd.f32 %v84, %v342
    %344 = vmatmul.bf16.gmra.mxu0 %v247
    %v345 = vpop.f32.mrf.mxu0
    %v346 = vadd.f32 %v84, %v345
    %v347 = vpop.f32.mrf.mxu0
    %v348 = vadd.f32 %v84, %v347
    %349 = vmatmul.bf16.gmra.mxu0 %v250
    %v350 = vpop.f32.mrf.mxu0
    %v351 = vadd.f32 %v84, %v350
    %v352 = vpop.f32.mrf.mxu0
    %v353 = vadd.f32 %v84, %v352
    %354 = vmatmul.bf16.gmra.mxu0 %v253
    %v355 = vpop.f32.mrf.mxu0
    %v356 = vadd.f32 %v84, %v355
    %v357 = vpop.f32.mrf.mxu0
    %v358 = vadd.f32 %v84, %v357
    %359 = vmatmul.bf16.gmra.mxu0 %v256
    %v360 = vpop.f32.mrf.mxu0
    %v361 = vadd.f32 %v84, %v360
    %v362 = vpop.f32.mrf.mxu0
    %v363 = vadd.f32 %v84, %v362
    %364 = vmatmul.bf16.gmra.mxu0 %v259
    %v365 = vpop.f32.mrf.mxu0
    %v366 = vadd.f32 %v84, %v365
    %v367 = vpop.f32.mrf.mxu0
    %v368 = vadd.f32 %v84, %v367
    %369 = vmatmul.bf16.gmra.mxu0 %v262
    %v370 = vpop.f32.mrf.mxu0
    %v371 = vadd.f32 %v84, %v370
    %v372 = vpop.f32.mrf.mxu0
    %v373 = vadd.f32 %v84, %v372
    %374 = vmatmul.bf16.gmra.mxu0 %v265
    %v375 = vpop.f32.mrf.mxu0
    %v376 = vadd.f32 %v84, %v375
    %v377 = vpop.f32.mrf.mxu0
    %v378 = vadd.f32 %v84, %v377
    %379 = vmatmul.bf16.gmra.mxu0 %v268
    %v380 = vpop.f32.mrf.mxu0
    %v381 = vadd.f32 %v84, %v380
    %v382 = vpop.f32.mrf.mxu0
    %v383 = vadd.f32 %v84, %v382
    %384 = vmatmul.bf16.gmra.mxu0 %v271
    %v385 = vpop.f32.mrf.mxu0
    %v386 = vadd.f32 %v84, %v385
    %v387 = vpop.f32.mrf.mxu0
    %v388 = vadd.f32 %v84, %v387
    %389 = vmatmul.bf16.gmra.mxu0 %v274
    %v390 = vpop.f32.mrf.mxu0
    %v391 = vadd.f32 %v84, %v390
    %v392 = vpop.f32.mrf.mxu0
    %v393 = vadd.f32 %v84, %v392
    %394 = vmatmul.bf16.gmra.mxu0 %v277
    %v395 = vpop.f32.mrf.mxu0
    %v396 = vadd.f32 %v84, %v395
    %v397 = vpop.f32.mrf.mxu0
    %v398 = vadd.f32 %v84, %v397
    %399 = vmatmul.bf16.gmra.mxu0 %v280
    %v400 = vpop.f32.mrf.mxu0
    %v401 = vadd.f32 %v84, %v400
    %v402 = vpop.f32.mrf.mxu0
    %v403 = vadd.f32 %v84, %v402
    %404 = vmatmul.bf16.gmra.mxu0 %v283
    %v405 = vpop.f32.mrf.mxu0
    %v406 = vadd.f32 %v84, %v405
    %v407 = vpop.f32.mrf.mxu0
    %v408 = vadd.f32 %v84, %v407
    %409 = vmatmul.bf16.gmra.mxu0 %v286
    %v410 = vpop.f32.mrf.mxu0
    %v411 = vadd.f32 %v84, %v410
    %v412 = vpop.f32.mrf.mxu0
    %v413 = vadd.f32 %v84, %v412
    %414 = vmatmul.bf16.gmra.mxu0 %v289
    %v415 = vpop.f32.mrf.mxu0
    %v416 = vadd.f32 %v84, %v415
    %v417 = vpop.f32.mrf.mxu0
    %v418 = vadd.f32 %v84, %v417
    %419 = vdwg.mxu0
    %v420 = vmax.f32 %v301, 0.0
    %v421 = vmax.f32 %v303, 0.0
    %v422 = vmax.f32 %v306, 0.0
    %v423 = vmax.f32 %v308, 0.0
    %v424 = vmax.f32 %v311, 0.0
    %v425 = vmax.f32 %v313, 0.0
    %v426 = vmax.f32 %v316, 0.0
    %v427 = vmax.f32 %v318, 0.0
    %v428 = vmax.f32 %v321, 0.0
    %v429 = vmax.f32 %v323, 0.0
    %v430 = vmax.f32 %v326, 0.0
    %v431 = vmax.f32 %v328, 0.0
    %v432 = vmax.f32 %v331, 0.0
    %v433 = vmax.f32 %v333, 0.0
    %v434 = vmax.f32 %v336, 0.0
    %v435 = vmax.f32 %v338, 0.0
    %v436 = vmax.f32 %v341, 0.0
    %v437 = vmax.f32 %v343, 0.0
    %v438 = vmax.f32 %v346, 0.0
    %v439 = vmax.f32 %v348, 0.0
    %v440 = vmax.f32 %v351, 0.0
    %v441 = vmax.f32 %v353, 0.0
    %v442 = vmax.f32 %v356, 0.0
    %v443 = vmax.f32 %v358, 0.0
    %v444 = vmax.f32 %v361, 0.0
    %v445 = vmax.f32 %v363, 0.0
    %v446 = vmax.f32 %v366, 0.0
    %v447 = vmax.f32 %v368, 0.0
    %v448 = vmax.f32 %v371, 0.0
    %v449 = vmax.f32 %v373, 0.0
    %v450 = vmax.f32 %v376, 0.0
    %v451 = vmax.f32 %v378, 0.0
    %v452 = vmax.f32 %v381, 0.0
    %v453 = vmax.f32 %v383, 0.0
    %v454 = vmax.f32 %v386, 0.0
    %v455 = vmax.f32 %v388, 0.0
    %v456 = vmax.f32 %v391, 0.0
    %v457 = vmax.f32 %v393, 0.0
    %v458 = vmax.f32 %v396, 0.0
    %v459 = vmax.f32 %v398, 0.0
    %v460 = vmax.f32 %v401, 0.0
    %v461 = vmax.f32 %v403, 0.0
    %v462 = vmax.f32 %v406, 0.0
    %v463 = vmax.f32 %v408, 0.0
    %v464 = vmax.f32 %v411, 0.0
    %v465 = vmax.f32 %v413, 0.0
    %v466 = vmax.f32 %v416, 0.0
    %v467 = vmax.f32 %v418, 0.0
    %v468 = vpack.c.bf16 %v421, %v420
    %v469 = vpack.c.bf16 %v423, %v422
    %v470 = vpack.c.bf16 %v425, %v424
    %v471 = vpack.c.bf16 %v427, %v426
    %v472 = vpack.c.bf16 %v429, %v428
    %v473 = vpack.c.bf16 %v431, %v430
    %v474 = vpack.c.bf16 %v433, %v432
    %v475 = vpack.c.bf16 %v435, %v434
    %v476 = vpack.c.bf16 %v437, %v436
    %v477 = vpack.c.bf16 %v439, %v438
    %v478 = vpack.c.bf16 %v441, %v440
    %v479 = vpack.c.bf16 %v443, %v442
    %v480 = vpack.c.bf16 %v445, %v444
    %v481 = vpack.c.bf16 %v447, %v446
    %v482 = vpack.c.bf16 %v449, %v448
    %v483 = vpack.c.bf16 %v451, %v450
    %v484 = vpack.c.bf16 %v453, %v452
    %v485 = vpack.c.bf16 %v455, %v454
    %v486 = vpack.c.bf16 %v457, %v456
    %v487 = vpack.c.bf16 %v459, %v458
    %v488 = vpack.c.bf16 %v461, %v460
    %v489 = vpack.c.bf16 %v463, %v462
    %v490 = vpack.c.bf16 %v465, %v464
    %v491 = vpack.c.bf16 %v467, %v466
    %v492 = vld [vmem:[%s3] sm:$0xf]
    %v493 = vld [vmem:[%s3 + $0x4] sm:$0xf]
    %v494 = vld [vmem:[%s3 + $0x8] sm:$0xf]
    %v495 = vld [vmem:[%s3 + $0xc] sm:$0xf]
    %v496 = vld [vmem:[%s4] sm:$0x1]
    %v498 = vperm.slane %v496, 0
    %v504 = vunpack.c.l.b16 %v492
    %v505 = vunpack.c.l.b16 %v493
    %v506 = vunpack.c.l.b16 %v494
    %v507 = vunpack.c.l.b16 %v495
    %v508 = vpack.c.b16 %v505, %v504
    %v509 = vpack.c.b16 %v507, %v506
    %v513 = vsel %vm218, %v468, 0
    %v516 = vsel %vm218, %v469, 0
    %v519 = vsel %vm218, %v470, 0
    %v522 = vsel %vm218, %v471, 0
    %v525 = vsel %vm218, %v472, 0
    %v528 = vsel %vm218, %v473, 0
    %v531 = vsel %vm218, %v474, 0
    %v534 = vsel %vm218, %v475, 0
    %v537 = vsel %vm218, %v476, 0
    %v540 = vsel %vm218, %v477, 0
    %v543 = vsel %vm218, %v478, 0
    %v546 = vsel %vm218, %v479, 0
    %v549 = vsel %vm218, %v480, 0
    %v552 = vsel %vm218, %v481, 0
    %v555 = vsel %vm218, %v482, 0
    %v558 = vsel %vm218, %v483, 0
    %v561 = vsel %vm218, %v484, 0
    %v564 = vsel %vm218, %v485, 0
    %v567 = vsel %vm218, %v486, 0
    %v570 = vsel %vm218, %v487, 0
    %v573 = vsel %vm218, %v488, 0
    %v576 = vsel %vm218, %v489, 0
    %v579 = vsel %vm218, %v490, 0
    %v582 = vsel %vm218, %v491, 0
    %584 = vmatpush.bf16.msra.mxu0 0
    %585 = vmatpush.bf16.msra.mxu0 0
    %586 = vmatpush.bf16.msra.mxu0 0
    %587 = vmatpush.bf16.msra.mxu0 0
    %588 = vmatpush.bf16.msra.mxu0 0
    %589 = vmatpush.bf16.msra.mxu0 0
    %590 = vmatpush.bf16.msra.mxu0 %v509
    %591 = vmatpush.bf16.msra.mxu0 %v508
    %592 = vmatmul.bf16.gmra.mxu0 %v513
    %v593 = vpop.f32.mrf.mxu0
    %v594 = vadd.f32 %v498, %v593
    %v595 = vpop.f32.mrf.mxu0
    %v596 = vadd.f32 %v498, %v595
    %597 = vmatmul.bf16.gmra.mxu0 %v516
    %v598 = vpop.f32.mrf.mxu0
    %v599 = vadd.f32 %v498, %v598
    %v600 = vpop.f32.mrf.mxu0
    %v601 = vadd.f32 %v498, %v600
    %602 = vmatmul.bf16.gmra.mxu0 %v519
    %v603 = vpop.f32.mrf.mxu0
    %v604 = vadd.f32 %v498, %v603
    %v605 = vpop.f32.mrf.mxu0
    %v606 = vadd.f32 %v498, %v605
    %607 = vmatmul.bf16.gmra.mxu0 %v522
    %v608 = vpop.f32.mrf.mxu0
    %v609 = vadd.f32 %v498, %v608
    %v610 = vpop.f32.mrf.mxu0
    %v611 = vadd.f32 %v498, %v610
    %612 = vmatmul.bf16.gmra.mxu0 %v525
    %v613 = vpop.f32.mrf.mxu0
    %v614 = vadd.f32 %v498, %v613
    %v615 = vpop.f32.mrf.mxu0
    %v616 = vadd.f32 %v498, %v615
    %617 = vmatmul.bf16.gmra.mxu0 %v528
    %v618 = vpop.f32.mrf.mxu0
    %v619 = vadd.f32 %v498, %v618
    %v620 = vpop.f32.mrf.mxu0
    %v621 = vadd.f32 %v498, %v620
    %622 = vmatmul.bf16.gmra.mxu0 %v531
    %v623 = vpop.f32.mrf.mxu0
    %v624 = vadd.f32 %v498, %v623
    %v625 = vpop.f32.mrf.mxu0
    %v626 = vadd.f32 %v498, %v625
    %627 = vmatmul.bf16.gmra.mxu0 %v534
    %v628 = vpop.f32.mrf.mxu0
    %v629 = vadd.f32 %v498, %v628
    %v630 = vpop.f32.mrf.mxu0
    %v631 = vadd.f32 %v498, %v630
    %632 = vmatmul.bf16.gmra.mxu0 %v537
    %v633 = vpop.f32.mrf.mxu0
    %v634 = vadd.f32 %v498, %v633
    %v635 = vpop.f32.mrf.mxu0
    %v636 = vadd.f32 %v498, %v635
    %637 = vmatmul.bf16.gmra.mxu0 %v540
    %v638 = vpop.f32.mrf.mxu0
    %v639 = vadd.f32 %v498, %v638
    %v640 = vpop.f32.mrf.mxu0
    %v641 = vadd.f32 %v498, %v640
    %642 = vmatmul.bf16.gmra.mxu0 %v543
    %v643 = vpop.f32.mrf.mxu0
    %v644 = vadd.f32 %v498, %v643
    %v645 = vpop.f32.mrf.mxu0
    %v646 = vadd.f32 %v498, %v645
    %647 = vmatmul.bf16.gmra.mxu0 %v546
    %v648 = vpop.f32.mrf.mxu0
    %v649 = vadd.f32 %v498, %v648
    %v650 = vpop.f32.mrf.mxu0
    %v651 = vadd.f32 %v498, %v650
    %652 = vmatmul.bf16.gmra.mxu0 %v549
    %v653 = vpop.f32.mrf.mxu0
    %v654 = vadd.f32 %v498, %v653
    %v655 = vpop.f32.mrf.mxu0
    %v656 = vadd.f32 %v498, %v655
    %657 = vmatmul.bf16.gmra.mxu0 %v552
    %v658 = vpop.f32.mrf.mxu0
    %v659 = vadd.f32 %v498, %v658
    %v660 = vpop.f32.mrf.mxu0
    %v661 = vadd.f32 %v498, %v660
    %662 = vmatmul.bf16.gmra.mxu0 %v555
    %v663 = vpop.f32.mrf.mxu0
    %v664 = vadd.f32 %v498, %v663
    %v665 = vpop.f32.mrf.mxu0
    %v666 = vadd.f32 %v498, %v665
    %667 = vmatmul.bf16.gmra.mxu0 %v558
    %v668 = vpop.f32.mrf.mxu0
    %v669 = vadd.f32 %v498, %v668
    %v670 = vpop.f32.mrf.mxu0
    %v671 = vadd.f32 %v498, %v670
    %672 = vmatmul.bf16.gmra.mxu0 %v561
    %v673 = vpop.f32.mrf.mxu0
    %v674 = vadd.f32 %v498, %v673
    %v675 = vpop.f32.mrf.mxu0
    %v676 = vadd.f32 %v498, %v675
    %677 = vmatmul.bf16.gmra.mxu0 %v564
    %v678 = vpop.f32.mrf.mxu0
    %v679 = vadd.f32 %v498, %v678
    %v680 = vpop.f32.mrf.mxu0
    %v681 = vadd.f32 %v498, %v680
    %682 = vmatmul.bf16.gmra.mxu0 %v567
    %v683 = vpop.f32.mrf.mxu0
    %v684 = vadd.f32 %v498, %v683
    %v685 = vpop.f32.mrf.mxu0
    %v686 = vadd.f32 %v498, %v685
    %687 = vmatmul.bf16.gmra.mxu0 %v570
    %v688 = vpop.f32.mrf.mxu0
    %v689 = vadd.f32 %v498, %v688
    %v690 = vpop.f32.mrf.mxu0
    %v691 = vadd.f32 %v498, %v690
    %692 = vmatmul.bf16.gmra.mxu0 %v573
    %v693 = vpop.f32.mrf.mxu0
    %v694 = vadd.f32 %v498, %v693
    %v695 = vpop.f32.mrf.mxu0
    %v696 = vadd.f32 %v498, %v695
    %697 = vmatmul.bf16.gmra.mxu0 %v576
    %v698 = vpop.f32.mrf.mxu0
    %v699 = vadd.f32 %v498, %v698
    %v700 = vpop.f32.mrf.mxu0
    %v701 = vadd.f32 %v498, %v700
    %702 = vmatmul.bf16.gmra.mxu0 %v579
    %v703 = vpop.f32.mrf.mxu0
    %v704 = vadd.f32 %v498, %v703
    %v705 = vpop.f32.mrf.mxu0
    %v706 = vadd.f32 %v498, %v705
    %707 = vmatmul.bf16.gmra.mxu0 %v582
    %v708 = vpop.f32.mrf.mxu0
    %v709 = vadd.f32 %v498, %v708
    %v710 = vpop.f32.mrf.mxu0
    %v711 = vadd.f32 %v498, %v710
    %712 = vdwg.mxu0
    %v713 = vmax.f32 %v594, 0.0
    %v714 = vmax.f32 %v596, 0.0
    %v715 = vmax.f32 %v599, 0.0
    %v716 = vmax.f32 %v601, 0.0
    %v717 = vmax.f32 %v604, 0.0
    %v718 = vmax.f32 %v606, 0.0
    %v719 = vmax.f32 %v609, 0.0
    %v720 = vmax.f32 %v611, 0.0
    %v721 = vmax.f32 %v614, 0.0
    %v722 = vmax.f32 %v616, 0.0
    %v723 = vmax.f32 %v619, 0.0
    %v724 = vmax.f32 %v621, 0.0
    %v725 = vmax.f32 %v624, 0.0
    %v726 = vmax.f32 %v626, 0.0
    %v727 = vmax.f32 %v629, 0.0
    %v728 = vmax.f32 %v631, 0.0
    %v729 = vmax.f32 %v634, 0.0
    %v730 = vmax.f32 %v636, 0.0
    %v731 = vmax.f32 %v639, 0.0
    %v732 = vmax.f32 %v641, 0.0
    %v733 = vmax.f32 %v644, 0.0
    %v734 = vmax.f32 %v646, 0.0
    %v735 = vmax.f32 %v649, 0.0
    %v736 = vmax.f32 %v651, 0.0
    %v737 = vmax.f32 %v654, 0.0
    %v738 = vmax.f32 %v656, 0.0
    %v739 = vmax.f32 %v659, 0.0
    %v740 = vmax.f32 %v661, 0.0
    %v741 = vmax.f32 %v664, 0.0
    %v742 = vmax.f32 %v666, 0.0
    %v743 = vmax.f32 %v669, 0.0
    %v744 = vmax.f32 %v671, 0.0
    %v745 = vmax.f32 %v674, 0.0
    %v746 = vmax.f32 %v676, 0.0
    %v747 = vmax.f32 %v679, 0.0
    %v748 = vmax.f32 %v681, 0.0
    %v749 = vmax.f32 %v684, 0.0
    %v750 = vmax.f32 %v686, 0.0
    %v751 = vmax.f32 %v689, 0.0
    %v752 = vmax.f32 %v691, 0.0
    %v753 = vmax.f32 %v694, 0.0
    %v754 = vmax.f32 %v696, 0.0
    %v755 = vmax.f32 %v699, 0.0
    %v756 = vmax.f32 %v701, 0.0
    %v757 = vmax.f32 %v704, 0.0
    %v758 = vmax.f32 %v706, 0.0
    %v759 = vmax.f32 %v709, 0.0
    %v760 = vmax.f32 %v711, 0.0
    %v761 = vpack.c.bf16 %v714, %v713
    %v762 = vpack.c.bf16 %v716, %v715
    %v763 = vpack.c.bf16 %v718, %v717
    %v764 = vpack.c.bf16 %v720, %v719
    %v765 = vpack.c.bf16 %v722, %v721
    %v766 = vpack.c.bf16 %v724, %v723
    %v767 = vpack.c.bf16 %v726, %v725
    %v768 = vpack.c.bf16 %v728, %v727
    %v769 = vpack.c.bf16 %v730, %v729
    %v770 = vpack.c.bf16 %v732, %v731
    %v771 = vpack.c.bf16 %v734, %v733
    %v772 = vpack.c.bf16 %v736, %v735
    %v773 = vpack.c.bf16 %v738, %v737
    %v774 = vpack.c.bf16 %v740, %v739
    %v775 = vpack.c.bf16 %v742, %v741
    %v776 = vpack.c.bf16 %v744, %v743
    %v777 = vpack.c.bf16 %v746, %v745
    %v778 = vpack.c.bf16 %v748, %v747
    %v779 = vpack.c.bf16 %v750, %v749
    %v780 = vpack.c.bf16 %v752, %v751
    %v781 = vpack.c.bf16 %v754, %v753
    %v782 = vpack.c.bf16 %v756, %v755
    %v783 = vpack.c.bf16 %v758, %v757
    %v784 = vpack.c.bf16 %v760, %v759
    %v785 = vld [vmem:[%s5] sm:$0x1]
    %v786 = vld [vmem:[#allocation2] sm:$0x1]
    %788 = vset.pattern.permute.xlu0 0
    %789 = vperm.xlu0 %788, %v786
    %v790 = vpop.permute.xlu0 %789
    %v792 = vperm.slane %v790, 0
    %vm793 = vcmask 130048
    %v795 = vsel %vm793, %v785, 0
    %v798 = vsel %vm793, %v761, 0
    %v801 = vsel %vm793, %v762, 0
    %v804 = vsel %vm793, %v763, 0
    %v807 = vsel %vm793, %v764, 0
    %v810 = vsel %vm793, %v765, 0
    %v813 = vsel %vm793, %v766, 0
    %v816 = vsel %vm793, %v767, 0
    %v819 = vsel %vm793, %v768, 0
    %v822 = vsel %vm793, %v769, 0
    %v825 = vsel %vm793, %v770, 0
    %v828 = vsel %vm793, %v771, 0
    %v831 = vsel %vm793, %v772, 0
    %v834 = vsel %vm793, %v773, 0
    %v837 = vsel %vm793, %v774, 0
    %v840 = vsel %vm793, %v775, 0
    %v843 = vsel %vm793, %v776, 0
    %v846 = vsel %vm793, %v777, 0
    %v849 = vsel %vm793, %v778, 0
    %v852 = vsel %vm793, %v779, 0
    %v855 = vsel %vm793, %v780, 0
    %v858 = vsel %vm793, %v781, 0
    %v861 = vsel %vm793, %v782, 0
    %v864 = vsel %vm793, %v783, 0
    %v867 = vsel %vm793, %v784, 0
    %869 = vmatpush.bf16.xpose.msra.mxu0 %v819
    %870 = vmatpush.bf16.xpose.msra.mxu0 %v816
    %871 = vmatpush.bf16.xpose.msra.mxu0 %v813
    %872 = vmatpush.bf16.xpose.msra.mxu0 %v810
    %873 = vmatpush.bf16.xpose.msra.mxu0 %v807
    %874 = vmatpush.bf16.xpose.msra.mxu0 %v804
    %875 = vmatpush.bf16.xpose.msra.mxu0 %v801
    %876 = vmatpush.bf16.xpose.msra.mxu0 %v798
    %877 = vmatmul.bf16.gmra.mxu0 %v795
    %v878 = vpop.f32.mrf.mxu0
    %v879 = vadd.f32 %v792, %v878
    %v880 = vpop.f32.mrf.mxu0
    %881 = vdwg.mxu0
    %882 = vmatpush.bf16.xpose.msra.mxu0 %v843
    %883 = vmatpush.bf16.xpose.msra.mxu0 %v840
    %884 = vmatpush.bf16.xpose.msra.mxu0 %v837
    %885 = vmatpush.bf16.xpose.msra.mxu0 %v834
    %886 = vmatpush.bf16.xpose.msra.mxu0 %v831
    %887 = vmatpush.bf16.xpose.msra.mxu0 %v828
    %888 = vmatpush.bf16.xpose.msra.mxu0 %v825
    %889 = vmatpush.bf16.xpose.msra.mxu0 %v822
    %890 = vmatmul.bf16.gmra.mxu0 %v795
    %v891 = vpop.f32.mrf.mxu0
    %v892 = vadd.f32 %v792, %v891
    %v893 = vpop.f32.mrf.mxu0
    %894 = vdwg.mxu0
    %895 = vmatpush.bf16.xpose.msra.mxu0 %v867
    %896 = vmatpush.bf16.xpose.msra.mxu0 %v864
    %897 = vmatpush.bf16.xpose.msra.mxu0 %v861
    %898 = vmatpush.bf16.xpose.msra.mxu0 %v858
    %899 = vmatpush.bf16.xpose.msra.mxu0 %v855
    %900 = vmatpush.bf16.xpose.msra.mxu0 %v852
    %901 = vmatpush.bf16.xpose.msra.mxu0 %v849
    %902 = vmatpush.bf16.xpose.msra.mxu0 %v846
    %903 = vmatmul.bf16.gmra.mxu0 %v795
    %v904 = vpop.f32.mrf.mxu0
    %v905 = vadd.f32 %v792, %v904
    %v906 = vpop.f32.mrf.mxu0
    %907 = vdwg.mxu0
    %v908 = vxor.u32 %v879, 2147483648
    %v909 = vxor.u32 %v892, 2147483648
    %v910 = vxor.u32 %v905, 2147483648
    %v911 = vmul.f32 %v908, 1.442695
    %v912 = vpow.pop %v911
    %v913 = vmul.f32 %v909, 1.442695
    %v914 = vpow.pop %v913
    %v915 = vmul.f32 %v910, 1.442695
    %v916 = vpow.pop %v915
    %v917 = vadd.f32 %v912, 1.0
    %v918 = vadd.f32 %v914, 1.0
    %v919 = vadd.f32 %v916, 1.0
    %v920 = vrcp.pop %v917
    %v921 = vmul.f32 %v917, %v920
    %v922 = vsub.f32 1.0, %v921
    %v923 = vmul.f32 %v920, %v922
    %v924 = vadd.f32 %v920, %v923
    %vm925 = vweird.f32 %v917
    %vm926 = vweird.f32 %v920
    %vm927 = vmor %vm925, %vm926
    %v928 = vsel %vm927, %v920, %v924
    %v929 = vand.u32 2147483647, %v917
    %vm930 = vcmp.eq.f32.partialorder %v929, 8.507059e+37
    %v931 = vand.u32 %v917, 2147483648
    %v932 = vor.u32 1.1754944e-38, %v931
    %v933 = vsel %vm930, %v932, %v928
    %v934 = vmul.f32 1.0, %v933
    %v935 = vrcp.pop %v918
    %v936 = vmul.f32 %v918, %v935
    %v937 = vsub.f32 1.0, %v936
    %v938 = vmul.f32 %v935, %v937
    %v939 = vadd.f32 %v935, %v938
    %vm940 = vweird.f32 %v918
    %vm941 = vweird.f32 %v935
    %vm942 = vmor %vm940, %vm941
    %v943 = vsel %vm942, %v935, %v939
    %v944 = vand.u32 2147483647, %v918
    %vm945 = vcmp.eq.f32.partialorder %v944, 8.507059e+37
    %v946 = vand.u32 %v918, 2147483648
    %v947 = vor.u32 1.1754944e-38, %v946
    %v948 = vsel %vm945, %v947, %v943
    %v949 = vmul.f32 1.0, %v948
    %v950 = vrcp.pop %v919
    %v951 = vmul.f32 %v919, %v950
    %v952 = vsub.f32 1.0, %v951
    %v953 = vmul.f32 %v950, %v952
    %v954 = vadd.f32 %v950, %v953
    %vm955 = vweird.f32 %v919
    %vm956 = vweird.f32 %v950
    %vm957 = vmor %vm955, %vm956
    %v958 = vsel %vm957, %v950, %v954
    %v959 = vand.u32 2147483647, %v919
    %vm960 = vcmp.eq.f32.partialorder %v959, 8.507059e+37
    %v961 = vand.u32 %v919, 2147483648
    %v962 = vor.u32 1.1754944e-38, %v961
    %v963 = vsel %vm960, %v962, %v958
    %v964 = vmul.f32 1.0, %v963
    %v968 = vrot.slane %v949, 7
    %v969 = vrot.slane %v964, 6
    %vm970 = vcmask 1040384
    %v971 = vsel %vm970, %v934, %v968
    %vm972 = vcmask 1041408
    %v973 = vsel %vm972, %v971, %v969
    %v975 = vlaneseq
    %vm976 = vcmp.ge.s32.totalorder %v975, 0
    %vm977 = vcmp.lt.s32.totalorder %v975, 384
    %vm978 = vmand %vm976, %vm977
    %979 = vst.msk [vmem:[#allocation3] sm:$0x7] %vm978, %v973
    // Predicated region
    $region30: #{tpu_custom_call.1} parent=1 // pred_check
      _
    $region31: #{tpu_custom_call.1} parent=1 // pred_check_branch
      %981 = sbr.rel (0) target = $region33
    $region32: #{tpu_custom_call.1} parent=1 // pred_region
      %983 = vsyncadd [#allocation4], 0
      %s985 = sshll.u32 [#allocation3], 4
      %s986 = int_to_ptr.vmem [resolvable:$true] %s985
      %s987 = sshll.u32 %s7, 4
      %s988 = int_to_ptr.hbm [resolvable:$true] %s987
      %990 = dma.vmem_to_hbm [thread:$0]  %s986, 48, %s988, [#allocation4]
    $region33: #{tpu_custom_call.1} parent=1 // pred_fallthru
      _
    // Predicated region
    $region34: #{tpu_custom_call.1} parent=1 // pred_check
      _
    $region35: #{tpu_custom_call.1} parent=1 // pred_check_branch
      %992 = sbr.rel (0) target = $region37
    $region36: #{tpu_custom_call.1} parent=1 // pred_region
      %994 = dma.done [#allocation4], 48
    $region37: #{tpu_custom_call.1} parent=1 // pred_fallthru
      _
    %995 = vsyncpa [#allocation4], 1

</llo_original>
